<compile_context>
chip_gen: v7x
topology: tpu7x:2x2x1
jax: 0.10.0
libtpu: 0.0.40
codegen_flags: <defaults>
</compile_context>

<pallas_src>
import functools

import jax
import jax.numpy as jnp
from jax.experimental import pallas as pl
from jax.experimental.pallas import tpu as pltpu


# ----------------------------- shared helpers -----------------------------

@functools.lru_cache(maxsize=None)
def _vmem_limit_bytes():
    """Generation-aware scoped-VMEM budget.

    v5e/v6e have 128 MiB physical VMEM (raise well above the 16/32 MiB scoped
    defaults); v7x has 64 MiB so cap at 3/4 of physical.  Falls back to 32 MiB.
    """
    try:
        cap = pltpu.get_tpu_info().vmem_capacity_bytes
        return int(min(cap * 3 // 4, 96 * 1024 * 1024))
    except Exception:
        return 32 * 1024 * 1024


def _cparams(n_parallel, n_arbitrary=0):
    return pltpu.CompilerParams(
        dimension_semantics=("parallel",) * n_parallel + ("arbitrary",) * n_arbitrary,
        vmem_limit_bytes=_vmem_limit_bytes(),
    )


def _pick_tile(n, target, align):
    """Largest divisor of n that is <= target and a multiple of `align`;
    falls back to the full dimension (always a legal block)."""
    if n <= target:
        return n
    for t in range(target, 0, -1):
        if n % t == 0 and t % align == 0:
            return t
    return n


def _layernorm(x, g, b, eps=1e-12):
    mu = jnp.mean(x, axis=-1, keepdims=True)
    var = jnp.mean((x - mu) * (x - mu), axis=-1, keepdims=True)
    return (x - mu) * jax.lax.rsqrt(var + eps) * g + b


def _gelu(x):
    # TODO(synk): HF BERT uses erf-GELU; tanh approximation kept for a
    # guaranteed Mosaic lowering (EUP tanh) -- small systematic divergence.
    return 0.5 * x * (1.0 + jnp.tanh(0.7978845608028654 * (x + 0.044715 * x * x * x)))


# --------------------- embeddings: (word+type) + pos + LayerNorm ---------------------

def _embed_ln_kernel(e_ref, p_ref, g_ref, b_ref, o_ref):
    x = e_ref[0].astype(jnp.float32) + p_ref[0].astype(jnp.float32)      # (ts, H)
    o_ref[0] = _layernorm(x, g_ref[...], b_ref[...]).astype(o_ref.dtype)


def embed_layernorm(emb, pos_e, gamma, beta):
    B, S, H = emb.shape
    ts = _pick_tile(S, 256, 8)
    blk = pl.BlockSpec((1, ts, H), lambda b, s: (b, s, 0))
    return pl.pallas_call(
        _embed_ln_kernel,
        grid=(B, S // ts),
        out_shape=jax.ShapeDtypeStruct((B, S, H), jnp.bfloat16),
        in_specs=[blk,
                  pl.BlockSpec((1, ts, H), lambda b, s: (0, s, 0)),
                  pl.BlockSpec((1, H), lambda b, s: (0, 0)),
                  pl.BlockSpec((1, H), lambda b, s: (0, 0))],
        out_specs=blk,
        compiler_params=_cparams(2),
    )(emb, pos_e, gamma.reshape(1, H), beta.reshape(1, H))


# ------- fused per-layer attention: QKV proj + attn + out-proj + residual + LN -------

def _attn_layer_kernel(hq_ref, hkv_ref, mask_ref, w_ref, b_ref, wo_ref, bo_ref,
                       g_ref, bln_ref, o_ref, acc_ref, *, scale):
    head = pl.program_id(2)

    @pl.when(head == 0)
    def _init():
        # residual rows + out-proj bias live in the f32 accumulator from the start
        acc_ref[...] = hq_ref[0].astype(jnp.float32) + bo_ref[...]

    x_q = hq_ref[0]                                  # (tq, H) bf16 (query/residual rows)
    x_kv = hkv_ref[0]                                # (S,  H) bf16 (full row for K/V)
    wq = w_ref[0, 0]; wk = w_ref[1, 0]; wv = w_ref[2, 0]      # (H, hd) bf16, this head
    bq = b_ref[0, 0]; bk = b_ref[1, 0]; bv = b_ref[2, 0]      # (1, hd) f32

    q = ((jnp.dot(x_q, wq, preferred_element_type=jnp.float32) + bq) * scale
         ).astype(jnp.bfloat16)
    k = (jnp.dot(x_kv, wk, preferred_element_type=jnp.float32) + bk).astype(jnp.bfloat16)
    v = (jnp.dot(x_kv, wv, preferred_element_type=jnp.float32) + bv).astype(jnp.bfloat16)

    s = jax.lax.dot_general(q, k, (((1,), (1,)), ((), ())),
                            preferred_element_type=jnp.float32)          # (tq, S) f32
    s = s + mask_ref[0]                              # (1, S) additive mask, once per step
    s = s - jnp.max(s, axis=-1, keepdims=True)
    p = jnp.exp(s)
    # approx reciprocal runs on the EUP slot (~1e-3 rel error in probabilities)
    p = p * pl.reciprocal(jnp.sum(p, axis=-1, keepdims=True), approx=True)
    ctx = jnp.dot(p.astype(jnp.bfloat16), v, preferred_element_type=jnp.float32)  # (tq, hd)
    # accumulate this head's contribution to the output projection
    acc_ref[...] += jnp.dot(ctx.astype(jnp.bfloat16), wo_ref[0],
                            preferred_element_type=jnp.float32)

    @pl.when(head == pl.num_programs(2) - 1)
    def _finalize():
        o_ref[0] = _layernorm(acc_ref[...], g_ref[...], bln_ref[...]).astype(o_ref.dtype)


def attention_layer(h, mask, qkv_w, qkv_b, wo, bo, gamma, beta, *, scale):
    B, S, H = h.shape
    _, nh, _, hd = qkv_w.shape
    # tq: query tile.  Larger tiles avoid re-projecting K/V per tile; smaller
    # tiles give more parallel grid steps (v7x megacore) and bound the (tq, S)
    # score buffer.  TODO(synk): at production S, keep K/V resident in scratch
    # across q-tiles to remove the K/V re-projection entirely; TODO(synk): pack
    # heads in pairs on v5e so PV matmuls fill the 128-wide MXU.
    tq = _pick_tile(S, 256, 8)
    kernel = functools.partial(_attn_layer_kernel, scale=scale)
    return pl.pallas_call(
        kernel,
        grid=(B, S // tq, nh),
        out_shape=jax.ShapeDtypeStruct((B, S, H), jnp.bfloat16),
        in_specs=[
            pl.BlockSpec((1, tq, H), lambda b, q, n: (b, q, 0)),         # query/residual rows
            pl.BlockSpec((1, S, H), lambda b, q, n: (b, 0, 0)),          # full row for K/V
            pl.BlockSpec((1, 1, S), lambda b, q, n: (b, 0, 0)),          # additive mask
            pl.BlockSpec((3, 1, H, hd), lambda b, q, n: (0, n, 0, 0)),   # per-head Q|K|V W
            pl.BlockSpec((3, 1, 1, hd), lambda b, q, n: (0, n, 0, 0)),   # per-head Q|K|V b
            pl.BlockSpec((1, hd, H), lambda b, q, n: (n, 0, 0)),         # per-head out-proj rows
            pl.BlockSpec((1, H), lambda b, q, n: (0, 0)),                # out-proj bias
            pl.BlockSpec((1, H), lambda b, q, n: (0, 0)),                # LN gamma
            pl.BlockSpec((1, H), lambda b, q, n: (0, 0)),                # LN beta
        ],
        out_specs=pl.BlockSpec((1, tq, H), lambda b, q, n: (b, q, 0)),
        scratch_shapes=[pltpu.VMEM((tq, H), jnp.float32)],
        compiler_params=_cparams(2, 1),
    )(h, h, mask, qkv_w, qkv_b, wo, bo.reshape(1, H),
      gamma.reshape(1, H), beta.reshape(1, H))


# ---------------- FF1 + GELU + FF2 (I-tiled) + residual + LayerNorm ----------------

def _ffn_kernel(h_ref, w1_ref, b1_ref, w2_ref, b2_ref, g_ref, bln_ref, o_ref, acc_ref):
    ic = pl.program_id(2)

    @pl.when(ic == 0)
    def _init():
        acc_ref[...] = h_ref[0].astype(jnp.float32) + b2_ref[...]

    t = jnp.dot(h_ref[0], w1_ref[...], preferred_element_type=jnp.float32) + b1_ref[...]
    t = _gelu(t).astype(jnp.bfloat16)                                    # (tq, ti)
    acc_ref[...] += jnp.dot(t, w2_ref[...], preferred_element_type=jnp.float32)

    @pl.when(ic == pl.num_programs(2) - 1)
    def _finalize():
        o_ref[0] = _layernorm(acc_ref[...], g_ref[...], bln_ref[...]).astype(o_ref.dtype)


def ffn_layer(h, w1, b1, w2, b2, gamma, beta):
    B, S, H = h.shape
    I = w1.shape[1]
    tq = _pick_tile(S, 256, 8)
    ti = _pick_tile(I, 1024, 128)     # caps (tq, ti) f32 intermediate + FF weight chunks
    return pl.pallas_call(
        _ffn_kernel,
        grid=(B, S // tq, I // ti),
        out_shape=jax.ShapeDtypeStruct((B, S, H), jnp.bfloat16),
        in_specs=[pl.BlockSpec((1, tq, H), lambda b, q, i: (b, q, 0)),
                  pl.BlockSpec((H, ti), lambda b, q, i: (0, i)),
                  pl.BlockSpec((1, ti), lambda b, q, i: (0, i)),
                  pl.BlockSpec((ti, H), lambda b, q, i: (i, 0)),
                  pl.BlockSpec((1, H), lambda b, q, i: (0, 0)),
                  pl.BlockSpec((1, H), lambda b, q, i: (0, 0)),
                  pl.BlockSpec((1, H), lambda b, q, i: (0, 0))],
        out_specs=pl.BlockSpec((1, tq, H), lambda b, q, i: (b, q, 0)),
        scratch_shapes=[pltpu.VMEM((tq, H), jnp.float32)],
        compiler_params=_cparams(2, 1),
    )(h, w1, b1.reshape(1, I), w2, b2.reshape(1, H),
      gamma.reshape(1, H), beta.reshape(1, H))


# ---------------- classifier (+ transpose) and fused weighted cross-entropy ----------------

def _transposed_logits(h_tile, w, b_col):
    # (C, ts) = contract the H dims of W (H,C) and h (ts,H): no explicit transpose op.
    return jax.lax.dot_general(w, h_tile, (((0,), (1,)), ((), ())),
                               preferred_element_type=jnp.float32) + b_col


def _cls_kernel(h_ref, w_ref, b_ref, score_ref):
    score_ref[0] = _transposed_logits(h_ref[0], w_ref[...], b_ref[...])   # (C, ts)


def classifier_scores(h, w, b):
    B, S, H = h.shape
    C = w.shape[1]
    ts = _pick_tile(S, 512, 128)
    return pl.pallas_call(
        _cls_kernel,
        grid=(B, S // ts),
        out_shape=jax.ShapeDtypeStruct((B, C, S), jnp.float32),
        in_specs=[pl.BlockSpec((1, ts, H), lambda b, s: (b, s, 0)),
                  pl.BlockSpec((H, C), lambda b, s: (0, 0)),
                  pl.BlockSpec((C, 1), lambda b, s: (0, 0))],
        out_specs=pl.BlockSpec((1, C, ts), lambda b, s: (b, 0, s)),
        compiler_params=_cparams(2),
    )(h, w, b.reshape(C, 1))


def _cls_ce_kernel(h_ref, w_ref, b_ref, lab_ref, cw_ref, score_ref, num_ref, den_ref):
    logits_t = _transposed_logits(h_ref[0], w_ref[...], b_ref[...])       # (C, ts) f32
    score_ref[0] = logits_t
    labels = lab_ref[0]                                                   # (1, ts) int32, -1 = ignore
    cw = cw_ref[...]                                                      # (C, 1) f32
    C, ts = logits_t.shape
    m = jnp.max(logits_t, axis=0, keepdims=True)                          # (1, ts)
    lse = m + jnp.log(jnp.sum(jnp.exp(logits_t - m), axis=0, keepdims=True))
    cls_iota = jax.lax.broadcasted_iota(jnp.int32, (C, ts), 0)
    onehot = (cls_iota == labels).astype(jnp.float32)                     # (C, ts)
    picked = jnp.sum(onehot * logits_t, axis=0, keepdims=True)            # (1, ts)
    wt = jnp.sum(onehot * cw, axis=0, keepdims=True)                      # (1, ts)
    valid = (labels != -1).astype(jnp.float32)                            # (1, ts)
    num_ref[0, 0, 0, 0] = jnp.sum((lse - picked) * wt * valid)
    den_ref[0, 0, 0, 0] = jnp.sum(wt * valid)


def classifier_scores_and_ce(h, w, b, labels, class_weights):
    """Per-(batch, seq-tile) partial (num, den) reduced in JAX: loss = sum(num)/sum(den).
    Matches F.cross_entropy(weight=..., ignore_index=-1, reduction='mean').
    NOTE: if every label is -1, den=0 and the loss is NaN (PyTorch does the same)."""
    B, S, H = h.shape
    C = w.shape[1]
    ts = _pick_tile(S, 512, 128)
    n_st = S // ts
    return pl.pallas_call(
        _cls_ce_kernel,
        grid=(B, n_st),
        out_shape=(jax.ShapeDtypeStruct((B, C, S), jnp.float32),
                   jax.ShapeDtypeStruct((B, n_st, 1, 1), jnp.float32),
                   jax.ShapeDtypeStruct((B, n_st, 1, 1), jnp.float32)),
        in_specs=[pl.BlockSpec((1, ts, H), lambda b, s: (b, s, 0)),
                  pl.BlockSpec((H, C), lambda b, s: (0, 0)),
                  pl.BlockSpec((C, 1), lambda b, s: (0, 0)),
                  pl.BlockSpec((1, 1, ts), lambda b, s: (b, 0, s)),
                  pl.BlockSpec((C, 1), lambda b, s: (0, 0))],
        out_specs=(pl.BlockSpec((1, C, ts), lambda b, s: (b, 0, s)),
                   pl.BlockSpec((1, 1, 1, 1), lambda b, s: (b, s, 0, 0)),
                   pl.BlockSpec((1, 1, 1, 1), lambda b, s: (b, s, 0, 0))),
        compiler_params=_cparams(2),
    )(h, w, b.reshape(C, 1),
      labels.reshape(B, 1, S).astype(jnp.int32),
      class_weights.astype(jnp.float32).reshape(C, 1))


# ----------------------------- parameter init -----------------------------

def init_params(key, *, vocab=64, max_pos=16, type_vocab=2, hidden=32, heads=2,
                intermediate=64, layers=2, num_labels=5):
    hd = hidden // heads
    keys = jax.random.split(key, 8 + 8 * layers)
    ki = iter(keys)

    def w(shape, scale=0.02, dtype=jnp.bfloat16):
        return (scale * jax.random.normal(next(ki), shape)).astype(dtype)

    params = {
        "config": dict(vocab=vocab, max_pos=max_pos, type_vocab=type_vocab,
                       hidden=hidden, heads=heads, intermediate=intermediate,
                       layers=layers, num_labels=num_labels),
        "word_emb": w((vocab, hidden)),
        "pos_emb": w((max_pos, hidden)),
        "type_emb": w((type_vocab, hidden)),
        "emb_ln_g": jnp.ones((hidden,), jnp.float32),
        "emb_ln_b": jnp.zeros((hidden,), jnp.float32),
        "cls_w": w((hidden, num_labels)),
        "cls_b": jnp.zeros((num_labels,), jnp.float32),
        # CRF transition matrix exists in the torch __init__ but is unused in forward().
        "transitions": jax.random.normal(next(ki), (num_labels, num_labels)).astype(jnp.float32),
        "layers": [],
    }
    for _ in range(layers):
        params["layers"].append(dict(
            # fused Q|K|V weights in head-major layout: (3, heads, H, head_dim)
            qkv_w=w((3, heads, hidden, hd)),
            qkv_b=jnp.zeros((3, heads, 1, hd), jnp.float32),
            # attention out-projection split per head: (heads, head_dim, H)
            ao_w=w((heads, hd, hidden)),
            ao_b=jnp.zeros((hidden,), jnp.float32),
            attn_ln_g=jnp.ones((hidden,), jnp.float32),
            attn_ln_b=jnp.zeros((hidden,), jnp.float32),
            ff1_w=w((hidden, intermediate)),
            ff1_b=jnp.zeros((intermediate,), jnp.float32),
            ff2_w=w((intermediate, hidden)),
            ff2_b=jnp.zeros((hidden,), jnp.float32),
            ffn_ln_g=jnp.ones((hidden,), jnp.float32),
            ffn_ln_b=jnp.zeros((hidden,), jnp.float32),
        ))
    return params


# ----------------------------- forward pass -----------------------------

def bert_hierarchy_extractor_forward(params, batch, labels=None, weights=None):
    cfg = params["config"]
    input_ids = batch["input_ids"]
    attention_mask = batch["attention_mask"]
    token_type_ids = batch["token_type_ids"]
    B, S = input_ids.shape
    H = cfg["hidden"]
    nh = cfg["heads"]
    hd = H // nh
    scale = 1.0 / float(hd) ** 0.5

    # --- embeddings ---------------------------------------------------------
    # word+type gathers stay in XLA (fused into a single (B,S,H) write); the
    # position add + LayerNorm run in one Pallas kernel.
    # TODO(synk): for production vocab sizes, replace with an in-kernel DMA
    # gather (scalar-prefetched ids + per-row async copies from the HBM table)
    # to avoid materializing the gathered (B,S,H) embedding tensor at all.
    emb = (jnp.take(params["word_emb"], input_ids, axis=0)
           + jnp.take(params["type_emb"], token_type_ids, axis=0))       # (B,S,H) bf16
    pos_e = params["pos_emb"][None, :S, :]                               # (1,S,H) bf16
    h = embed_layernorm(emb, pos_e, params["emb_ln_g"], params["emb_ln_b"])

    # additive attention mask (B,1,S) f32 -- reused by every head/q-tile, never replicated
    ext_mask = ((1.0 - attention_mask.astype(jnp.float32)) * -10000.0)[:, None, :]

    # TODO(synk): dropout layers of HF BERT are omitted (inference/eval semantics).
    for lyr in params["layers"]:
        h = attention_layer(h, ext_mask, lyr["qkv_w"], lyr["qkv_b"],
                            lyr["ao_w"], lyr["ao_b"],
                            lyr["attn_ln_g"], lyr["attn_ln_b"], scale=scale)
        h = ffn_layer(h, lyr["ff1_w"], lyr["ff1_b"], lyr["ff2_w"], lyr["ff2_b"],
                      lyr["ffn_ln_g"], lyr["ffn_ln_b"])

    if labels is None:
        # classifier + transpose fused; output already (B, num_labels, S)
        return classifier_scores(h, params["cls_w"], params["cls_b"])

    if weights is None:
        weights = jnp.ones((cfg["num_labels"],), jnp.float32)
    bert_score, num, den = classifier_scores_and_ce(
        h, params["cls_w"], params["cls_b"], labels, weights)
    loss = jnp.sum(num) / jnp.sum(den)
    return loss, bert_score


# ----------------------------- main -----------------------------

if __name__ == "__main__":
    key = jax.random.PRNGKey(0)
    kp, kid, klab = jax.random.split(key, 3)

    B, S, C = 2, 8, 5
    params = init_params(kp, vocab=64, max_pos=16, hidden=32, heads=2,
                         intermediate=64, layers=2, num_labels=C)

    input_ids = jax.random.randint(kid, (B, S), 0, 64, dtype=jnp.int32)
    attention_mask = jnp.ones((B, S), jnp.int32)
    token_type_ids = jnp.zeros((B, S), jnp.int32)
    labels = jax.random.randint(klab, (B, S), 0, C, dtype=jnp.int32)
    labels = labels.at[:, -1].set(-1)                     # exercise ignore_index=-1
    weights = jnp.linspace(0.5, 1.5, C).astype(jnp.float32)

    batch = dict(input_ids=input_ids, attention_mask=attention_mask,
                 token_type_ids=token_type_ids)

    # labels=None path: returns transposed logits (B, num_labels, S)
    score_only = bert_hierarchy_extractor_forward(params, batch)
    # labels path: returns (loss, transposed logits)
    loss, bert_score = bert_hierarchy_extractor_forward(params, batch, labels, weights)

    jax.block_until_ready((score_only, loss, bert_score))

    assert score_only.shape == (B, C, S) and score_only.dtype == jnp.float32
    assert bert_score.shape == (B, C, S) and bert_score.dtype == jnp.float32
    assert loss.shape == () and loss.dtype == jnp.float32
    assert bool(jnp.isfinite(loss))

    print("KERNEL_OK")
</pallas_src>

<mosaic_0001>
module attributes {stable_mosaic.version = 11 : i64} {
  func.func @_embed_ln_kernel(%arg0: i32, %arg1: i32, %arg2: memref<1x8x32xbf16, #tpu.memory_space<vmem>>, %arg3: memref<1x8x32xbf16, #tpu.memory_space<vmem>>, %arg4: memref<1x32xf32, #tpu.memory_space<vmem>>, %arg5: memref<1x32xf32, #tpu.memory_space<vmem>>, %arg6: memref<1x8x32xbf16, #tpu.memory_space<vmem>>) attributes {dimension_semantics = [#tpu.dimension_semantics<parallel>, #tpu.dimension_semantics<parallel>], iteration_bounds = array<i64: 2, 1>, scalar_prefetch = 0 : i64, scratch_operands = 0 : i64, tpu.core_type = #tpu.core_type<tc>, window_params = [{transform_indices = @transform_0, window_bounds = array<i64: 1, 8, 32>}, {transform_indices = @transform_1, window_bounds = array<i64: 1, 8, 32>}, {pipeline_mode = #tpu.pipeline_mode<synchronous>, transform_indices = @transform_2, window_bounds = array<i64: 1, 32>}, {pipeline_mode = #tpu.pipeline_mode<synchronous>, transform_indices = @transform_3, window_bounds = array<i64: 1, 32>}, {transform_indices = @transform_4, window_bounds = array<i64: 1, 8, 32>}]} {
    %c0 = arith.constant 0 : index
    %c0_0 = arith.constant 0 : index
    %c0_1 = arith.constant 0 : index
    %0 = vector.load %arg2[%c0, %c0_0, %c0_1] : memref<1x8x32xbf16, #tpu.memory_space<vmem>>, vector<1x8x32xbf16>
    %1 = vector.shape_cast %0 : vector<1x8x32xbf16> to vector<8x32xbf16>
    %2 = arith.extf %1 : vector<8x32xbf16> to vector<8x32xf32>
    %c0_2 = arith.constant 0 : index
    %c0_3 = arith.constant 0 : index
    %c0_4 = arith.constant 0 : index
    %3 = vector.load %arg3[%c0_2, %c0_3, %c0_4] : memref<1x8x32xbf16, #tpu.memory_space<vmem>>, vector<1x8x32xbf16>
    %4 = vector.shape_cast %3 : vector<1x8x32xbf16> to vector<8x32xbf16>
    %5 = arith.extf %4 : vector<8x32xbf16> to vector<8x32xf32>
    %6 = arith.addf %2, %5 : vector<8x32xf32>
    %c0_5 = arith.constant 0 : index
    %c0_6 = arith.constant 0 : index
    %7 = vector.load %arg4[%c0_5, %c0_6] : memref<1x32xf32, #tpu.memory_space<vmem>>, vector<1x32xf32>
    %c0_7 = arith.constant 0 : index
    %c0_8 = arith.constant 0 : index
    %8 = vector.load %arg5[%c0_7, %c0_8] : memref<1x32xf32, #tpu.memory_space<vmem>>, vector<1x32xf32>
    %cst = arith.constant dense<0.000000e+00> : vector<8xf32>
    %9 = vector.multi_reduction <add>, %6, %cst [1] : vector<8x32xf32> to vector<8xf32>
    %10 = vector.shape_cast %9 : vector<8xf32> to vector<8x1xf32>
    %cst_9 = arith.constant 3.200000e+01 : f32
    %11 = vector.broadcast %cst_9 : f32 to vector<8x1xf32>
    %12 = arith.divf %10, %11 : vector<8x1xf32>
    %13 = vector.broadcast %12 : vector<8x1xf32> to vector<8x32xf32>
    %14 = arith.subf %6, %13 : vector<8x32xf32>
    %15 = vector.broadcast %12 : vector<8x1xf32> to vector<8x32xf32>
    %16 = arith.subf %6, %15 : vector<8x32xf32>
    %17 = arith.mulf %14, %16 : vector<8x32xf32>
    %cst_10 = arith.constant dense<0.000000e+00> : vector<8xf32>
    %18 = vector.multi_reduction <add>, %17, %cst_10 [1] : vector<8x32xf32> to vector<8xf32>
    %19 = vector.shape_cast %18 : vector<8xf32> to vector<8x1xf32>
    %cst_11 = arith.constant 3.200000e+01 : f32
    %20 = vector.broadcast %cst_11 : f32 to vector<8x1xf32>
    %21 = arith.divf %19, %20 : vector<8x1xf32>
    %22 = vector.broadcast %12 : vector<8x1xf32> to vector<8x32xf32>
    %23 = arith.subf %6, %22 : vector<8x32xf32>
    %cst_12 = arith.constant 9.99999996E-13 : f32
    %24 = vector.broadcast %cst_12 : f32 to vector<8x1xf32>
    %25 = arith.addf %21, %24 : vector<8x1xf32>
    %26 = math.rsqrt %25 : vector<8x1xf32>
    %27 = vector.broadcast %26 : vector<8x1xf32> to vector<8x32xf32>
    %28 = arith.mulf %23, %27 : vector<8x32xf32>
    %29 = vector.broadcast %7 : vector<1x32xf32> to vector<8x32xf32>
    %30 = arith.mulf %28, %29 : vector<8x32xf32>
    %31 = vector.broadcast %8 : vector<1x32xf32> to vector<8x32xf32>
    %32 = arith.addf %30, %31 : vector<8x32xf32>
    %33 = arith.truncf %32 : vector<8x32xf32> to vector<8x32xbf16>
    %c0_13 = arith.constant 0 : index
    %c0_14 = arith.constant 0 : index
    %c0_15 = arith.constant 0 : index
    %34 = vector.load %arg6[%c0_13, %c0_14, %c0_15] : memref<1x8x32xbf16, #tpu.memory_space<vmem>>, vector<1x8x32xbf16>
    %35 = vector.shape_cast %34 : vector<1x8x32xbf16> to vector<8x32xbf16>
    %36 = vector.shape_cast %33 : vector<8x32xbf16> to vector<1x8x32xbf16>
    tpu.vector_store %arg6[%c0_13, %c0_14, %c0_15], %36 {strides = array<i32>} : memref<1x8x32xbf16, #tpu.memory_space<vmem>>, vector<1x8x32xbf16>,
    return
  }
  func.func @transform_0(%arg0: i32, %arg1: i32) -> (i32, i32, i32) {
    %c0_i32 = arith.constant 0 : i32
    %c0_i32_0 = arith.constant 0 : i32
    return %arg0, %arg1, %c0_i32 : i32, i32, i32
  }
  func.func @transform_1(%arg0: i32, %arg1: i32) -> (i32, i32, i32) {
    %c0_i32 = arith.constant 0 : i32
    %c0_i32_0 = arith.constant 0 : i32
    %c0_i32_1 = arith.constant 0 : i32
    return %c0_i32, %arg1, %c0_i32_0 : i32, i32, i32
  }
  func.func @transform_2(%arg0: i32, %arg1: i32) -> (i32, i32) {
    %c0_i32 = arith.constant 0 : i32
    %c0_i32_0 = arith.constant 0 : i32
    %c0_i32_1 = arith.constant 0 : i32
    return %c0_i32, %c0_i32_0 : i32, i32
  }
  func.func @transform_3(%arg0: i32, %arg1: i32) -> (i32, i32) {
    %c0_i32 = arith.constant 0 : i32
    %c0_i32_0 = arith.constant 0 : i32
    %c0_i32_1 = arith.constant 0 : i32
    return %c0_i32, %c0_i32_0 : i32, i32
  }
  func.func @transform_4(%arg0: i32, %arg1: i32) -> (i32, i32, i32) {
    %c0_i32 = arith.constant 0 : i32
    %c0_i32_0 = arith.constant 0 : i32
    return %arg0, %arg1, %c0_i32 : i32, i32, i32
  }
}

</mosaic_0001>

<llo_original>
// kernel: tpu_custom_call.1
$region0: #{tpu_custom_call.1}
  #allocation0 [shape = 'u32[]', space=smem, size = 0x4, offset = 0x4, fixed_abs, tag = 'smem constant byte address 0x4 - core index']
  #allocation1 [shape = 'u32[144,128]{1,0:T(1,128)}', space=vmem, size = 0x12000, scoped, tag = 'internal scratch']
  %s0 = inlined_call_operand.hbm [shape: bf16[2,8,32], index: 0, kind: input, shape index: {}]
  %s1 = inlined_call_operand.hbm [shape: bf16[1,8,32], index: 1, kind: input, shape index: {}]
  %s2 = inlined_call_operand.vmem [shape: f32[1,32], index: 2, kind: input, shape index: {}]
  %s3 = inlined_call_operand.vmem [shape: f32[1,32], index: 3, kind: input, shape index: {}]
  %s4 = inlined_call_operand.hbm [shape: bf16[2,8,32], index: 4, kind: output, shape index: {}]
  %s5 = sld [smem:[#allocation0]]
  $region57: #{tpu_custom_call.1} parent=0
    _
  %s7 = ssub.s32 1, %s5
  %s8 = scalar_select 0, %s7, %s5
  $region1: #{tpu_custom_call.1} parent=0
    #allocation2 [shape = 'u8[4096]{0}', space=vmem, size = 0x1000, scoped, tag = 'input window, operand 0']
    #allocation3 [shape = 's32[2]{0}', space=sflag, size = 0x8, scoped, tag = 'scoped memory for tpu_custom_call.1']
    #allocation4 [shape = 's32[2]{0}', space=sflag, size = 0x8, scoped, tag = 'scoped memory for tpu_custom_call.1']
    #allocation5 [shape = 'u8[2048]{0}', space=vmem, size = 0x800, scoped, tag = 'input window, operand 1, single buffered']
    #allocation6 [shape = 's32[1]{0}', space=sflag, size = 0x4, scoped, tag = 'scoped memory for tpu_custom_call.1']
    #allocation7 [shape = 'u8[4096]{0}', space=vmem, size = 0x1000, scoped, tag = 'output window, operand 0']
    %9 = vsyncpa [#allocation3], 0
    %s10 = scalar_lea.sflag [#allocation3], 1
    %11 = vsyncpa %s10, 0
    %12 = vsyncpa [#allocation6], 0
    %13 = vsyncpa [#allocation4], 0
    %s14 = scalar_lea.sflag [#allocation4], 1
    %15 = vsyncpa %s14, 0
    loop: start=0, step=1, limit=4
    $region2: #{tpu_custom_call.1} parent=1 // loop_pre_header
      _
    $region3: #{tpu_custom_call.1} parent=1 // loop_header
      %s17 = sphi 0, %s21
      %p18 = scmp.ge.s32.totalorder %s17, 4
      %s24 = sphi 0, %s36
      %s25 = sphi 0, %s32
      %s26 = sphi 0, %s24
      %s27 = sphi 0, %s25
      %s28 = sphi 0, %s26
      %s29 = sphi 0, %s27
      %s41 = sphi 0, %s43
      %s44 = sphi 0, %s41
      %s45 = sphi 0, %s44
      %s61 = sphi 0, %s45
      %s67 = sphi 0, %s69
      %s70 = sphi 0, %s67
      %s71 = sphi 0, %s70
      %s87 = sphi 0, %s71
      %s91 = sphi 0, %s91
      %s93 = sphi 0, %s91
      %s94 = sphi 0, %s93
      %s108 = sphi 0, %s94
      %s112 = sphi 0, %s112
      %s114 = sphi 0, %s112
      %s115 = sphi 0, %s114
      %s129 = sphi 0, %s115
      %s137 = sphi 0, %s139
      %s140 = sphi 0, %s137
      %s141 = sphi 0, %s140
      %s157 = sphi 0, %s141
    $region4: #{tpu_custom_call.1} parent=1 // loop_header_branch
      %20 = sbr.rel (%p18) target = $region8
    $region5: #{tpu_custom_call.1} parent=1 // loop_body
      %s22 = ssub.s32 %s17, 1
      %s23 = ssub.s32 %s17, 2
      %s30 = sadd.s32 1, %s25
      %p31 = scmp.ge.s32.totalorder %s30, 1
      %s32 = scalar_select %p31, 0, %s30
      %s33 = sadd.s32 1, %s24
      %s34 = scalar_select %p31, %s33, %s24
      %p35 = scmp.ge.s32.totalorder %s34, 2
      %s36 = scalar_select %p35, 0, %s34
      %s37 = ssub.s32 %s24, %s36
      %s38 = ssub.s32 %s25, %s32
      %s39 = sor.u32 %s37, %s38
      %p40 = scmp.eq.s32.totalorder %s39, 0
      %s42 = sadd.s32 %s41, 1
      %s43 = scalar_select %p40, %s41, %s42
      %p46 = pneg %p40
      %p47 = scmp.eq.s32.totalorder %s17, 1
      %p48 = por %p46, %p47
      %p49 = scmp.ne.s32.totalorder %s41, %s44
      %p50 = scmp.eq.s32.totalorder %s17, 0
      %p51 = por %p49, %p50
      %p52 = scmp.ne.s32.totalorder %s41, %s44
      %p53 = scmp.eq.s32.totalorder %s22, 1
      %p54 = por %p52, %p53
      %p55 = scmp.ne.s32.totalorder %s44, %s45
      %p56 = scmp.eq.s32.totalorder %s22, 0
      %p57 = por %p55, %p56
      %p58 = scmp.ne.s32.totalorder %s44, %s45
      %p59 = scmp.eq.s32.totalorder %s23, 1
      %p60 = por %p58, %p59
      %p62 = scmp.ne.s32.totalorder %s45, %s61
      %p63 = scmp.eq.s32.totalorder %s23, 0
      %p64 = por %p62, %p63
      %s65 = ssub.s32 %s25, %s32
      %p66 = scmp.eq.s32.totalorder %s65, 0
      %s68 = sadd.s32 %s67, 1
      %s69 = scalar_select %p66, %s67, %s68
      %p72 = pneg %p66
      %p73 = scmp.eq.s32.totalorder %s17, 1
      %p74 = por %p72, %p73
      %p75 = scmp.ne.s32.totalorder %s67, %s70
      %p76 = scmp.eq.s32.totalorder %s17, 0
      %p77 = por %p75, %p76
      %p78 = scmp.ne.s32.totalorder %s67, %s70
      %p79 = scmp.eq.s32.totalorder %s22, 1
      %p80 = por %p78, %p79
      %p81 = scmp.ne.s32.totalorder %s70, %s71
      %p82 = scmp.eq.s32.totalorder %s22, 0
      %p83 = por %p81, %p82
      %p84 = scmp.ne.s32.totalorder %s70, %s71
      %p85 = scmp.eq.s32.totalorder %s23, 1
      %p86 = por %p84, %p85
      %p88 = scmp.ne.s32.totalorder %s71, %s87
      %p89 = scmp.eq.s32.totalorder %s23, 0
      %p90 = por %p88, %p89
      %s92 = sadd.s32 %s91, 1
      %p95 = scmp.eq.s32.totalorder %s17, 1
      %p96 = scmp.ne.s32.totalorder %s91, %s93
      %p97 = scmp.eq.s32.totalorder %s17, 0
      %p98 = por %p96, %p97
      %p99 = scmp.ne.s32.totalorder %s91, %s93
      %p100 = scmp.eq.s32.totalorder %s22, 1
      %p101 = por %p99, %p100
      %p102 = scmp.ne.s32.totalorder %s93, %s94
      %p103 = scmp.eq.s32.totalorder %s22, 0
      %p104 = por %p102, %p103
      %p105 = scmp.ne.s32.totalorder %s93, %s94
      %p106 = scmp.eq.s32.totalorder %s23, 1
      %p107 = por %p105, %p106
      %p109 = scmp.ne.s32.totalorder %s94, %s108
      %p110 = scmp.eq.s32.totalorder %s23, 0
      %p111 = por %p109, %p110
      %s113 = sadd.s32 %s112, 1
      %p116 = scmp.eq.s32.totalorder %s17, 1
      %p117 = scmp.ne.s32.totalorder %s112, %s114
      %p118 = scmp.eq.s32.totalorder %s17, 0
      %p119 = por %p117, %p118
      %p120 = scmp.ne.s32.totalorder %s112, %s114
      %p121 = scmp.eq.s32.totalorder %s22, 1
      %p122 = por %p120, %p121
      %p123 = scmp.ne.s32.totalorder %s114, %s115
      %p124 = scmp.eq.s32.totalorder %s22, 0
      %p125 = por %p123, %p124
      %p126 = scmp.ne.s32.totalorder %s114, %s115
      %p127 = scmp.eq.s32.totalorder %s23, 1
      %p128 = por %p126, %p127
      %p130 = scmp.ne.s32.totalorder %s115, %s129
      %p131 = scmp.eq.s32.totalorder %s23, 0
      %p132 = por %p130, %p131
      %s133 = ssub.s32 %s24, %s36
      %s134 = ssub.s32 %s25, %s32
      %s135 = sor.u32 %s133, %s134
      %p136 = scmp.eq.s32.totalorder %s135, 0
      %s138 = sadd.s32 %s137, 1
      %s139 = scalar_select %p136, %s137, %s138
      %p142 = pneg %p136
      %p143 = scmp.eq.s32.totalorder %s17, 1
      %p144 = por %p142, %p143
      %p145 = scmp.ne.s32.totalorder %s137, %s140
      %p146 = scmp.eq.s32.totalorder %s17, 0
      %p147 = por %p145, %p146
      %p148 = scmp.ne.s32.totalorder %s137, %s140
      %p149 = scmp.eq.s32.totalorder %s22, 1
      %p150 = por %p148, %p149
      %p151 = scmp.ne.s32.totalorder %s140, %s141
      %p152 = scmp.eq.s32.totalorder %s22, 0
      %p153 = por %p151, %p152
      %p154 = scmp.ne.s32.totalorder %s140, %s141
      %p155 = scmp.eq.s32.totalorder %s23, 1
      %p156 = por %p154, %p155
      %p158 = scmp.ne.s32.totalorder %s141, %s157
      %p159 = scmp.eq.s32.totalorder %s23, 0
      %p160 = por %p158, %p159
      %p161 = scmp.le.s32.totalorder 1, %s17
      %p162 = scmp.lt.s32.totalorder %s17, 3
      %p163 = pnand %p161, %p162
      %p164 = pneg %p163
      // Predicated region
      $region9: #{tpu_custom_call.1} parent=5 // pred_check
        _
      $region10: #{tpu_custom_call.1} parent=5 // pred_check_branch
        %166 = sbr.rel (%p163) target = $region12
      $region11: #{tpu_custom_call.1} parent=5 // pred_region
        %s167 = ssub.s32 %s17, 1
        // Predicated region
        $region13: #{tpu_custom_call.1} parent=11 // pred_check
          %p168 = pneg %p83
        $region14: #{tpu_custom_call.1} parent=11 // pred_check_branch
          %170 = sbr.rel (%p168) target = $region16
        $region15: #{tpu_custom_call.1} parent=11 // pred_region
          %s172 = ssub.s32 64, 64
          %173 = vsyncadd [#allocation6], %s172
          %s174 = smul.addr %s27, 64
          %s175 = scalar_lea.hbm %s1, %s174
          %s177 = sshll.u32 [#allocation5], 4
          %s178 = int_to_ptr.vmem [resolvable:$true] %s177
          %180 = dma.hbm_to_vmem [thread:$0]  %s175, 64, %s178, [#allocation6]
        $region16: #{tpu_custom_call.1} parent=11 // pred_fallthru
          _
        // Predicated region
        $region17: #{tpu_custom_call.1} parent=11 // pred_check
          %p181 = pneg %p104
        $region18: #{tpu_custom_call.1} parent=11 // pred_check_branch
          %183 = sbr.rel (%p181) target = $region20
        $region19: #{tpu_custom_call.1} parent=11 // pred_region
          _
        $region20: #{tpu_custom_call.1} parent=11 // pred_fallthru
          _
        // Predicated region
        $region21: #{tpu_custom_call.1} parent=11 // pred_check
          %p184 = pneg %p125
        $region22: #{tpu_custom_call.1} parent=11 // pred_check_branch
          %186 = sbr.rel (%p184) target = $region24
        $region23: #{tpu_custom_call.1} parent=11 // pred_region
          _
        $region24: #{tpu_custom_call.1} parent=11 // pred_fallthru
          _
      $region12: #{tpu_custom_call.1} parent=5 // pred_fallthru
        _
      %p187 = scmp.lt.s32.totalorder %s17, 2
      // Predicated region
      $region25: #{tpu_custom_call.1} parent=5 // pred_check
        %p188 = pneg %p187
      $region26: #{tpu_custom_call.1} parent=5 // pred_check_branch
        %190 = sbr.rel (%p188) target = $region28
      $region27: #{tpu_custom_call.1} parent=5 // pred_region
        // Predicated region
        $region29: #{tpu_custom_call.1} parent=27 // pred_check
          %p191 = pneg %p51
        $region30: #{tpu_custom_call.1} parent=27 // pred_check_branch
          %193 = sbr.rel (%p191) target = $region32
        $region31: #{tpu_custom_call.1} parent=27 // pred_region
          %s194 = sand.u32 %s41, 1
          %s195 = scalar_lea.sflag [#allocation3], %s194
          %s196 = sand.u32 %s41, 1
          %s197 = smul.addr %s196, 4
          %s198 = scalar_lea.vmem [#allocation2], %s197
          %s200 = ssub.s32 64, 64
          %201 = vsyncadd %s195, %s200
          %s202 = sadd.s32 %s25, %s24
          %s203 = smul.addr %s202, 64
          %s204 = scalar_lea.hbm %s0, %s203
          %s206 = sshll.u32 %s198, 4
          %s207 = int_to_ptr.vmem [resolvable:$true] %s206
          %209 = dma.hbm_to_vmem [thread:$0]  %s204, 64, %s207, %s195
        $region32: #{tpu_custom_call.1} parent=27 // pred_fallthru
          _
      $region28: #{tpu_custom_call.1} parent=5 // pred_fallthru
        _
      %p210 = scmp.le.s32.totalorder 1, %s17
      %p211 = scmp.lt.s32.totalorder %s17, 3
      %p212 = pnand %p210, %p211
      %p213 = pneg %p212
      // Predicated region
      $region33: #{tpu_custom_call.1} parent=5 // pred_check
        _
      $region34: #{tpu_custom_call.1} parent=5 // pred_check_branch
        %215 = sbr.rel (%p212) target = $region36
      $region35: #{tpu_custom_call.1} parent=5 // pred_region
        %s216 = ssub.s32 %s17, 1
        %s217 = sand.u32 %s44, 1
        %s218 = scalar_lea.sflag [#allocation3], %s217
        %s219 = sand.u32 %s44, 1
        %s220 = smul.addr %s219, 4
        %s221 = scalar_lea.vmem [#allocation2], %s220
        // Predicated region
        $region37: #{tpu_custom_call.1} parent=35 // pred_check
          %p222 = pneg %p57
        $region38: #{tpu_custom_call.1} parent=35 // pred_check_branch
          %224 = sbr.rel (%p222) target = $region40
        $region39: #{tpu_custom_call.1} parent=35 // pred_region
          %225 = dma.done %s218, 64
        $region40: #{tpu_custom_call.1} parent=35 // pred_fallthru
          _
        // Predicated region
        $region41: #{tpu_custom_call.1} parent=35 // pred_check
          %p226 = pneg %p83
        $region42: #{tpu_custom_call.1} parent=35 // pred_check_branch
          %228 = sbr.rel (%p226) target = $region44
        $region43: #{tpu_custom_call.1} parent=35 // pred_region
          %229 = dma.done [#allocation6], 64
        $region44: #{tpu_custom_call.1} parent=35 // pred_fallthru
          _
        %s230 = sand.u32 %s44, 1
        %s231 = scalar_lea.sflag [#allocation3], %s230
        %s232 = sand.u32 %s44, 1
        %s233 = smul.addr %s232, 4
        %s234 = scalar_lea.vmem [#allocation2], %s233
        %p235 = pneg %p57
        %p236 = pneg %p54
        %p237 = pneg %p83
        %p238 = pneg %p80
        %p239 = pneg %p104
        %p240 = pneg %p101
        %p241 = pneg %p125
        %p242 = pneg %p122
        %p243 = pneg %p153
        %p244 = pneg %p150
        %s245 = sand.u32 %s140, 1
        %s246 = scalar_lea.sflag [#allocation4], %s245
        %s247 = sand.u32 %s140, 1
        %s248 = smul.addr %s247, 4
        %s249 = scalar_lea.vmem [#allocation7], %s248
        %v250 = vld [vmem:[%s221] sm:$0xf]
        %v251 = vunpack.c.l.bf16 %v250
        %v252 = vld [vmem:[#allocation5] sm:$0xf]
        %v253 = vunpack.c.l.bf16 %v252
        %v254 = vadd.f32 %v251, %v253
        %v255 = vld [vmem:[%s2] sm:$0x1]
        %v256 = vld [vmem:[%s3] sm:$0x1]
        %vm257 = vcmask 261120
        %v258 = vsel %vm257, %v254, 0.0
        %259 = vadd.xlane.f32.xlu0 %v258
        %v260 = vpop.xlane.xlu0 %259
        %v261 = vrcp.pop 32.0
        %v262 = vmul.f32 %v260, %v261
        %v263 = vsub.f32 %v254, %v262
        %v264 = vmul.f32 %v263, %v263
        %v265 = vsel %vm257, %v264, 0.0
        %266 = vadd.xlane.f32.xlu0 %v265
        %v267 = vpop.xlane.xlu0 %266
        %v268 = vmul.f32 %v267, %v261
        %v269 = vadd.f32 %v268, 1e-12
        %v270 = vrsqrt.pop %v269
        %v271 = vmul.f32 %v263, %v270
        %v273 = vlaneseq
        %v274 = vshrl.u32 %v273, 7
        %v275 = vsub.s32 0, %v274
        %v276 = vrot.slane %v255, %v275
        %v278 = vmul.f32 %v271, %v276
        %v280 = vlaneseq
        %v281 = vshrl.u32 %v280, 7
        %v282 = vsub.s32 0, %v281
        %v283 = vrot.slane %v256, %v282
        %v285 = vadd.f32 %v278, %v283
        %v286 = vpack.c.bf16 %v285, %v285
        %vm287 = vcmask 257024
        %288 = vst.msk [vmem:[%s249] sm:$0xf] %vm287, %v286
        %s289 = sand.u32 %s140, 1
        %s290 = scalar_lea.sflag [#allocation4], %s289
        %s291 = sand.u32 %s140, 1
        %s292 = smul.addr %s291, 4
        %s293 = scalar_lea.vmem [#allocation7], %s292
        // Predicated region
        $region45: #{tpu_custom_call.1} parent=35 // pred_check
          %p294 = pneg %p150
        $region46: #{tpu_custom_call.1} parent=35 // pred_check_branch
          %296 = sbr.rel (%p294) target = $region48
        $region47: #{tpu_custom_call.1} parent=35 // pred_region
          %s298 = ssub.s32 64, 64
          %299 = vsyncadd %s290, %s298
          %s300 = sadd.s32 %s27, %s26
          %s301 = smul.addr %s300, 64
          %s302 = scalar_lea.hbm %s4, %s301
          %s304 = sshll.u32 %s293, 4
          %s305 = int_to_ptr.vmem [resolvable:$true] %s304
          %307 = dma.vmem_to_hbm [thread:$0]  %s305, 64, %s302, %s290
        $region48: #{tpu_custom_call.1} parent=35 // pred_fallthru
          _
      $region36: #{tpu_custom_call.1} parent=5 // pred_fallthru
        _
      %p308 = scmp.le.s32.totalorder 2, %s17
      // Predicated region
      $region49: #{tpu_custom_call.1} parent=5 // pred_check
        %p309 = pneg %p308
      $region50: #{tpu_custom_call.1} parent=5 // pred_check_branch
        %311 = sbr.rel (%p309) target = $region52
      $region51: #{tpu_custom_call.1} parent=5 // pred_region
        %s312 = ssub.s32 %s17, 2
        // Predicated region
        $region53: #{tpu_custom_call.1} parent=51 // pred_check
          %p313 = pneg %p156
        $region54: #{tpu_custom_call.1} parent=51 // pred_check_branch
          %315 = sbr.rel (%p313) target = $region56
        $region55: #{tpu_custom_call.1} parent=51 // pred_region
          %s316 = sand.u32 %s141, 1
          %s317 = scalar_lea.sflag [#allocation4], %s316
          %s318 = sand.u32 %s141, 1
          %s319 = smul.addr %s318, 4
          %s320 = scalar_lea.vmem [#allocation7], %s319
          %321 = dma.done %s317, 64
        $region56: #{tpu_custom_call.1} parent=51 // pred_fallthru
          _
      $region52: #{tpu_custom_call.1} parent=5 // pred_fallthru
        _
    $region6: #{tpu_custom_call.1} parent=1 // loop_footer
      %s21 = sadd.s32 1, %s17
    $region7: #{tpu_custom_call.1} parent=1 // loop_footer_branch
      %16 = sbr.rel target = $region3
    $region8: #{tpu_custom_call.1} parent=1 // loop_exit
      _
    %322 = vsyncpa [#allocation3], 1
    %s323 = scalar_lea.sflag [#allocation3], 1
    %324 = vsyncpa %s323, 1
    %325 = vsyncpa [#allocation6], 1
    %326 = vsyncpa [#allocation4], 1
    %s327 = scalar_lea.sflag [#allocation4], 1
    %328 = vsyncpa %s327, 1

</llo_original>
